<compile_context>
chip_gen: v6e
topology: v6e:2x2x1
jax: 0.10.0
libtpu: 0.0.40
codegen_flags: <defaults>
</compile_context>

<pallas_src>
import math

import jax
import jax.numpy as jnp
from jax import lax
from jax.experimental import pallas as pl
from jax.experimental.pallas import tpu as pltpu

# Default splits from the module: (3,)*5 + (2,)*3 -> total feature dim of 21.
SPLITS = (3,) * 5 + (2,) * 3

_LANES = 128        # TPU vreg lane count
_SUB_ROWS = 128     # rows per in-kernel sub-tile (16 f32 vregs -> no spills)


def _round_up(n, m):
    return ((n + m - 1) // m) * m


def _pad_lanes(n):
    return _round_up(n, _LANES)


def _pick_pack(m, feat):
    """Largest G such that G*feat fits in one vreg column (<=128 lanes) and
    G divides M, so the row-packing reshape is a free contiguous reshape."""
    gmax = max(1, min(_LANES // feat, 8)) if feat <= _LANES else 1
    for g in range(gmax, 0, -1):
        if m % g == 0:
            return g
    return 1


def _vmem_plan():
    """(vmem_limit_bytes, block_budget_bytes) per TPU generation.
    v5e/v6e have 128 MiB physical VMEM; v7x only 64 MiB, so stay conservative
    there (and on anything we fail to identify)."""
    try:
        kind = jax.devices()[0].device_kind.lower()
    except Exception:
        kind = ""
    if ("v5" in kind) or ("v6" in kind):
        return 80 * 1024 * 1024, 36 * 1024 * 1024
    return 40 * 1024 * 1024, 18 * 1024 * 1024


def _make_split_kernel(splits, offsets, feat, pack, sub, nsub):
    """Kernel over one (tb, pack*feat) input block and len(splits) output
    blocks of shape (tb, pack*s).  For packed row b, lane r*feat + f holds
    logical row (b*pack + r), feature f; output k receives lanes
    [r*feat+o_k, r*feat+o_k+s_k) copied to lanes [r*s_k, (r+1)*s_k)."""

    def copy_block(x, out_refs, rows):
        # All slice offsets are static and stay inside a single vreg column
        # (pack*feat <= 128), so these lower to simple rotates + masked stores.
        for o_ref, o, s in zip(out_refs, offsets, splits):
            for r in range(pack):
                o_ref[rows, r * s:(r + 1) * s] = \
                    x[:, r * feat + o:r * feat + o + s]

    if nsub == 1:
        def kernel(x_ref, *out_refs):
            copy_block(x_ref[...], out_refs, slice(None))
    else:
        def kernel(x_ref, *out_refs):
            def body(t, carry):
                row0 = pl.multiple_of(t * sub, sub)
                rows = pl.ds(row0, sub)
                copy_block(x_ref[rows, :], out_refs, rows)
                return carry
            lax.fori_loop(0, nsub, body, 0, unroll=False)

    return kernel


def split_layer(x, splits=SPLITS):
    """Pallas equivalent of SplitLayer.forward: returns a tuple of arrays with
    last-dim sizes `splits` whose concatenation along the last axis is x
    (same semantics as torch.split(x, splits, dim=-1))."""
    splits = tuple(int(s) for s in splits)
    feat = sum(splits)
    assert x.shape[-1] == feat, (
        f"last dim {x.shape[-1]} must equal sum(splits)={feat}")

    offsets, off = [], 0
    for s in splits:
        offsets.append(off)
        off += s

    lead = x.shape[:-1]
    m = math.prod(lead) if lead else 1

    if m == 0:  # zero-sized leading dims: nothing to copy
        return tuple(x[..., o:o + s] for o, s in zip(offsets, splits))

    itemsize = jnp.dtype(x.dtype).itemsize

    # ---- row packing (review items 1 & 6): free contiguous reshapes --------
    pack = _pick_pack(m, feat)
    r_rows = m // pack
    x_packed = x.reshape(r_rows, pack * feat)

    # ---- row-tile selection (review items 2-5) ------------------------------
    # Double-buffered VMEM per packed row: input block + all output blocks,
    # each lane-padded to a multiple of 128.
    bytes_per_row = 2 * itemsize * (
        _pad_lanes(pack * feat) + sum(_pad_lanes(pack * s) for s in splits))
    vmem_limit, block_budget = _vmem_plan()

    if r_rows >= _SUB_ROWS:
        tb = max(_SUB_ROWS,
                 (block_budget // bytes_per_row) // _SUB_ROWS * _SUB_ROWS)
        # v7x has two TensorCores: keep >=2 (ideally >=4) grid steps so the
        # "parallel" axis can shard across them (harmless on 1-TC chips).
        if r_rows >= 4 * _SUB_ROWS:
            tb = min(tb, (r_rows // 4) // _SUB_ROWS * _SUB_ROWS)
        elif r_rows >= 2 * _SUB_ROWS:
            tb = min(tb, (r_rows // 2) // _SUB_ROWS * _SUB_ROWS)
        tb = min(tb, (r_rows // _SUB_ROWS) * _SUB_ROWS)
        sub = _SUB_ROWS
    else:
        tb = r_rows          # single full-extent block (legal: equals full dim)
        sub = r_rows
    nsub = tb // sub

    grid = (pl.cdiv(r_rows, tb),)

    in_specs = [pl.BlockSpec((tb, pack * feat), lambda i: (i, 0))]
    out_specs = tuple(
        pl.BlockSpec((tb, pack * s), lambda i: (i, 0)) for s in splits)
    out_shape = tuple(
        jax.ShapeDtypeStruct((r_rows, pack * s), x.dtype) for s in splits)

    outs = pl.pallas_call(
        _make_split_kernel(splits, offsets, feat, pack, sub, nsub),
        grid=grid,
        in_specs=in_specs,
        out_specs=out_specs,
        out_shape=out_shape,
        compiler_params=pltpu.CompilerParams(
            dimension_semantics=("parallel",),
            vmem_limit_bytes=vmem_limit,
        ),
        cost_estimate=pl.CostEstimate(
            flops=0, transcendentals=0,
            bytes_accessed=2 * m * feat * itemsize),
    )(x_packed)

    # (r_rows, pack*s) -> (..., s): contiguous reshape, free.
    return tuple(o.reshape(lead + (s,)) for o, s in zip(outs, splits))


if __name__ == "__main__":
    root = jax.random.PRNGKey(0)

    def run_and_check(shape, key):
        x = jax.random.normal(key, shape, dtype=jnp.float32)
        outs = jax.block_until_ready(split_layer(x))
        off = 0
        for o, s in zip(outs, SPLITS):
            ref = x[..., off:off + s]
            off += s
            if o.shape != ref.shape or not bool(jnp.allclose(o, ref)):
                return False
        return True

    k1, k2 = jax.random.split(root)
    feat = sum(SPLITS)  # 21
    # Small, module-typical shape: exercises the single-block path.
    ok = run_and_check((2, 8, feat), k1)
    # Slightly larger: exercises the multi-step grid + in-kernel sub-tiling.
    ok = ok and run_and_check((512, 12, feat), k2)

    if ok:
        print("KERNEL_OK")
    else:
        raise SystemExit("mismatch vs reference split")
</pallas_src>

<mosaic_0001>
module attributes {stable_mosaic.version = 11 : i64} {
  func.func @kernel(%arg0: i32, %arg1: memref<4x84xf32, #tpu.memory_space<vmem>>, %arg2: memref<4x12xf32, #tpu.memory_space<vmem>>, %arg3: memref<4x12xf32, #tpu.memory_space<vmem>>, %arg4: memref<4x12xf32, #tpu.memory_space<vmem>>, %arg5: memref<4x12xf32, #tpu.memory_space<vmem>>, %arg6: memref<4x12xf32, #tpu.memory_space<vmem>>, %arg7: memref<4x8xf32, #tpu.memory_space<vmem>>, %arg8: memref<4x8xf32, #tpu.memory_space<vmem>>, %arg9: memref<4x8xf32, #tpu.memory_space<vmem>>) attributes {dimension_semantics = [#tpu.dimension_semantics<parallel>], iteration_bounds = array<i64: 1>, scalar_prefetch = 0 : i64, scratch_operands = 0 : i64, tpu.core_type = #tpu.core_type<tc>, window_params = [{transform_indices = @transform_0, window_bounds = array<i64: 4, 84>}, {transform_indices = @transform_1, window_bounds = array<i64: 4, 12>}, {transform_indices = @transform_2, window_bounds = array<i64: 4, 12>}, {transform_indices = @transform_3, window_bounds = array<i64: 4, 12>}, {transform_indices = @transform_4, window_bounds = array<i64: 4, 12>}, {transform_indices = @transform_5, window_bounds = array<i64: 4, 12>}, {transform_indices = @transform_6, window_bounds = array<i64: 4, 8>}, {transform_indices = @transform_7, window_bounds = array<i64: 4, 8>}, {transform_indices = @transform_8, window_bounds = array<i64: 4, 8>}]} {
    %c0 = arith.constant 0 : index
    %c0_0 = arith.constant 0 : index
    %0 = vector.load %arg1[%c0, %c0_0] : memref<4x84xf32, #tpu.memory_space<vmem>>, vector<4x84xf32>
    %1 = vector.extract_strided_slice %0 {offsets = [0, 0], sizes = [4, 3], strides = [1, 1]} : vector<4x84xf32> to vector<4x3xf32>
    %c0_1 = arith.constant 0 : index
    %c0_2 = arith.constant 0 : index
    %2 = vector.load %arg2[%c0_1, %c0_2] : memref<4x12xf32, #tpu.memory_space<vmem>>, vector<4x3xf32>
    tpu.vector_store %arg2[%c0_1, %c0_2], %1 {strides = array<i32>} : memref<4x12xf32, #tpu.memory_space<vmem>>, vector<4x3xf32>,
    %3 = vector.extract_strided_slice %0 {offsets = [0, 21], sizes = [4, 3], strides = [1, 1]} : vector<4x84xf32> to vector<4x3xf32>
    %c0_3 = arith.constant 0 : index
    %c3 = arith.constant 3 : index
    %4 = vector.load %arg2[%c0_3, %c3] : memref<4x12xf32, #tpu.memory_space<vmem>>, vector<4x3xf32>
    tpu.vector_store %arg2[%c0_3, %c3], %3 {strides = array<i32>} : memref<4x12xf32, #tpu.memory_space<vmem>>, vector<4x3xf32>,
    %5 = vector.extract_strided_slice %0 {offsets = [0, 42], sizes = [4, 3], strides = [1, 1]} : vector<4x84xf32> to vector<4x3xf32>
    %c0_4 = arith.constant 0 : index
    %c6 = arith.constant 6 : index
    %6 = vector.load %arg2[%c0_4, %c6] : memref<4x12xf32, #tpu.memory_space<vmem>>, vector<4x3xf32>
    tpu.vector_store %arg2[%c0_4, %c6], %5 {strides = array<i32>} : memref<4x12xf32, #tpu.memory_space<vmem>>, vector<4x3xf32>,
    %7 = vector.extract_strided_slice %0 {offsets = [0, 63], sizes = [4, 3], strides = [1, 1]} : vector<4x84xf32> to vector<4x3xf32>
    %c0_5 = arith.constant 0 : index
    %c9 = arith.constant 9 : index
    %8 = vector.load %arg2[%c0_5, %c9] : memref<4x12xf32, #tpu.memory_space<vmem>>, vector<4x3xf32>
    tpu.vector_store %arg2[%c0_5, %c9], %7 {strides = array<i32>} : memref<4x12xf32, #tpu.memory_space<vmem>>, vector<4x3xf32>,
    %9 = vector.extract_strided_slice %0 {offsets = [0, 3], sizes = [4, 3], strides = [1, 1]} : vector<4x84xf32> to vector<4x3xf32>
    %c0_6 = arith.constant 0 : index
    %c0_7 = arith.constant 0 : index
    %10 = vector.load %arg3[%c0_6, %c0_7] : memref<4x12xf32, #tpu.memory_space<vmem>>, vector<4x3xf32>
    tpu.vector_store %arg3[%c0_6, %c0_7], %9 {strides = array<i32>} : memref<4x12xf32, #tpu.memory_space<vmem>>, vector<4x3xf32>,
    %11 = vector.extract_strided_slice %0 {offsets = [0, 24], sizes = [4, 3], strides = [1, 1]} : vector<4x84xf32> to vector<4x3xf32>
    %c0_8 = arith.constant 0 : index
    %c3_9 = arith.constant 3 : index
    %12 = vector.load %arg3[%c0_8, %c3_9] : memref<4x12xf32, #tpu.memory_space<vmem>>, vector<4x3xf32>
    tpu.vector_store %arg3[%c0_8, %c3_9], %11 {strides = array<i32>} : memref<4x12xf32, #tpu.memory_space<vmem>>, vector<4x3xf32>,
    %13 = vector.extract_strided_slice %0 {offsets = [0, 45], sizes = [4, 3], strides = [1, 1]} : vector<4x84xf32> to vector<4x3xf32>
    %c0_10 = arith.constant 0 : index
    %c6_11 = arith.constant 6 : index
    %14 = vector.load %arg3[%c0_10, %c6_11] : memref<4x12xf32, #tpu.memory_space<vmem>>, vector<4x3xf32>
    tpu.vector_store %arg3[%c0_10, %c6_11], %13 {strides = array<i32>} : memref<4x12xf32, #tpu.memory_space<vmem>>, vector<4x3xf32>,
    %15 = vector.extract_strided_slice %0 {offsets = [0, 66], sizes = [4, 3], strides = [1, 1]} : vector<4x84xf32> to vector<4x3xf32>
    %c0_12 = arith.constant 0 : index
    %c9_13 = arith.constant 9 : index
    %16 = vector.load %arg3[%c0_12, %c9_13] : memref<4x12xf32, #tpu.memory_space<vmem>>, vector<4x3xf32>
    tpu.vector_store %arg3[%c0_12, %c9_13], %15 {strides = array<i32>} : memref<4x12xf32, #tpu.memory_space<vmem>>, vector<4x3xf32>,
    %17 = vector.extract_strided_slice %0 {offsets = [0, 6], sizes = [4, 3], strides = [1, 1]} : vector<4x84xf32> to vector<4x3xf32>
    %c0_14 = arith.constant 0 : index
    %c0_15 = arith.constant 0 : index
    %18 = vector.load %arg4[%c0_14, %c0_15] : memref<4x12xf32, #tpu.memory_space<vmem>>, vector<4x3xf32>
    tpu.vector_store %arg4[%c0_14, %c0_15], %17 {strides = array<i32>} : memref<4x12xf32, #tpu.memory_space<vmem>>, vector<4x3xf32>,
    %19 = vector.extract_strided_slice %0 {offsets = [0, 27], sizes = [4, 3], strides = [1, 1]} : vector<4x84xf32> to vector<4x3xf32>
    %c0_16 = arith.constant 0 : index
    %c3_17 = arith.constant 3 : index
    %20 = vector.load %arg4[%c0_16, %c3_17] : memref<4x12xf32, #tpu.memory_space<vmem>>, vector<4x3xf32>
    tpu.vector_store %arg4[%c0_16, %c3_17], %19 {strides = array<i32>} : memref<4x12xf32, #tpu.memory_space<vmem>>, vector<4x3xf32>,
    %21 = vector.extract_strided_slice %0 {offsets = [0, 48], sizes = [4, 3], strides = [1, 1]} : vector<4x84xf32> to vector<4x3xf32>
    %c0_18 = arith.constant 0 : index
    %c6_19 = arith.constant 6 : index
    %22 = vector.load %arg4[%c0_18, %c6_19] : memref<4x12xf32, #tpu.memory_space<vmem>>, vector<4x3xf32>
    tpu.vector_store %arg4[%c0_18, %c6_19], %21 {strides = array<i32>} : memref<4x12xf32, #tpu.memory_space<vmem>>, vector<4x3xf32>,
    %23 = vector.extract_strided_slice %0 {offsets = [0, 69], sizes = [4, 3], strides = [1, 1]} : vector<4x84xf32> to vector<4x3xf32>
    %c0_20 = arith.constant 0 : index
    %c9_21 = arith.constant 9 : index
    %24 = vector.load %arg4[%c0_20, %c9_21] : memref<4x12xf32, #tpu.memory_space<vmem>>, vector<4x3xf32>
    tpu.vector_store %arg4[%c0_20, %c9_21], %23 {strides = array<i32>} : memref<4x12xf32, #tpu.memory_space<vmem>>, vector<4x3xf32>,
    %25 = vector.extract_strided_slice %0 {offsets = [0, 9], sizes = [4, 3], strides = [1, 1]} : vector<4x84xf32> to vector<4x3xf32>
    %c0_22 = arith.constant 0 : index
    %c0_23 = arith.constant 0 : index
    %26 = vector.load %arg5[%c0_22, %c0_23] : memref<4x12xf32, #tpu.memory_space<vmem>>, vector<4x3xf32>
    tpu.vector_store %arg5[%c0_22, %c0_23], %25 {strides = array<i32>} : memref<4x12xf32, #tpu.memory_space<vmem>>, vector<4x3xf32>,
    %27 = vector.extract_strided_slice %0 {offsets = [0, 30], sizes = [4, 3], strides = [1, 1]} : vector<4x84xf32> to vector<4x3xf32>
    %c0_24 = arith.constant 0 : index
    %c3_25 = arith.constant 3 : index
    %28 = vector.load %arg5[%c0_24, %c3_25] : memref<4x12xf32, #tpu.memory_space<vmem>>, vector<4x3xf32>
    tpu.vector_store %arg5[%c0_24, %c3_25], %27 {strides = array<i32>} : memref<4x12xf32, #tpu.memory_space<vmem>>, vector<4x3xf32>,
    %29 = vector.extract_strided_slice %0 {offsets = [0, 51], sizes = [4, 3], strides = [1, 1]} : vector<4x84xf32> to vector<4x3xf32>
    %c0_26 = arith.constant 0 : index
    %c6_27 = arith.constant 6 : index
    %30 = vector.load %arg5[%c0_26, %c6_27] : memref<4x12xf32, #tpu.memory_space<vmem>>, vector<4x3xf32>
    tpu.vector_store %arg5[%c0_26, %c6_27], %29 {strides = array<i32>} : memref<4x12xf32, #tpu.memory_space<vmem>>, vector<4x3xf32>,
    %31 = vector.extract_strided_slice %0 {offsets = [0, 72], sizes = [4, 3], strides = [1, 1]} : vector<4x84xf32> to vector<4x3xf32>
    %c0_28 = arith.constant 0 : index
    %c9_29 = arith.constant 9 : index
    %32 = vector.load %arg5[%c0_28, %c9_29] : memref<4x12xf32, #tpu.memory_space<vmem>>, vector<4x3xf32>
    tpu.vector_store %arg5[%c0_28, %c9_29], %31 {strides = array<i32>} : memref<4x12xf32, #tpu.memory_space<vmem>>, vector<4x3xf32>,
    %33 = vector.extract_strided_slice %0 {offsets = [0, 12], sizes = [4, 3], strides = [1, 1]} : vector<4x84xf32> to vector<4x3xf32>
    %c0_30 = arith.constant 0 : index
    %c0_31 = arith.constant 0 : index
    %34 = vector.load %arg6[%c0_30, %c0_31] : memref<4x12xf32, #tpu.memory_space<vmem>>, vector<4x3xf32>
    tpu.vector_store %arg6[%c0_30, %c0_31], %33 {strides = array<i32>} : memref<4x12xf32, #tpu.memory_space<vmem>>, vector<4x3xf32>,
    %35 = vector.extract_strided_slice %0 {offsets = [0, 33], sizes = [4, 3], strides = [1, 1]} : vector<4x84xf32> to vector<4x3xf32>
    %c0_32 = arith.constant 0 : index
    %c3_33 = arith.constant 3 : index
    %36 = vector.load %arg6[%c0_32, %c3_33] : memref<4x12xf32, #tpu.memory_space<vmem>>, vector<4x3xf32>
    tpu.vector_store %arg6[%c0_32, %c3_33], %35 {strides = array<i32>} : memref<4x12xf32, #tpu.memory_space<vmem>>, vector<4x3xf32>,
    %37 = vector.extract_strided_slice %0 {offsets = [0, 54], sizes = [4, 3], strides = [1, 1]} : vector<4x84xf32> to vector<4x3xf32>
    %c0_34 = arith.constant 0 : index
    %c6_35 = arith.constant 6 : index
    %38 = vector.load %arg6[%c0_34, %c6_35] : memref<4x12xf32, #tpu.memory_space<vmem>>, vector<4x3xf32>
    tpu.vector_store %arg6[%c0_34, %c6_35], %37 {strides = array<i32>} : memref<4x12xf32, #tpu.memory_space<vmem>>, vector<4x3xf32>,
    %39 = vector.extract_strided_slice %0 {offsets = [0, 75], sizes = [4, 3], strides = [1, 1]} : vector<4x84xf32> to vector<4x3xf32>
    %c0_36 = arith.constant 0 : index
    %c9_37 = arith.constant 9 : index
    %40 = vector.load %arg6[%c0_36, %c9_37] : memref<4x12xf32, #tpu.memory_space<vmem>>, vector<4x3xf32>
    tpu.vector_store %arg6[%c0_36, %c9_37], %39 {strides = array<i32>} : memref<4x12xf32, #tpu.memory_space<vmem>>, vector<4x3xf32>,
    %41 = vector.extract_strided_slice %0 {offsets = [0, 15], sizes = [4, 2], strides = [1, 1]} : vector<4x84xf32> to vector<4x2xf32>
    %c0_38 = arith.constant 0 : index
    %c0_39 = arith.constant 0 : index
    %42 = vector.load %arg7[%c0_38, %c0_39] : memref<4x8xf32, #tpu.memory_space<vmem>>, vector<4x2xf32>
    tpu.vector_store %arg7[%c0_38, %c0_39], %41 {strides = array<i32>} : memref<4x8xf32, #tpu.memory_space<vmem>>, vector<4x2xf32>,
    %43 = vector.extract_strided_slice %0 {offsets = [0, 36], sizes = [4, 2], strides = [1, 1]} : vector<4x84xf32> to vector<4x2xf32>
    %c0_40 = arith.constant 0 : index
    %c2 = arith.constant 2 : index
    %44 = vector.load %arg7[%c0_40, %c2] : memref<4x8xf32, #tpu.memory_space<vmem>>, vector<4x2xf32>
    tpu.vector_store %arg7[%c0_40, %c2], %43 {strides = array<i32>} : memref<4x8xf32, #tpu.memory_space<vmem>>, vector<4x2xf32>,
    %45 = vector.extract_strided_slice %0 {offsets = [0, 57], sizes = [4, 2], strides = [1, 1]} : vector<4x84xf32> to vector<4x2xf32>
    %c0_41 = arith.constant 0 : index
    %c4 = arith.constant 4 : index
    %46 = vector.load %arg7[%c0_41, %c4] : memref<4x8xf32, #tpu.memory_space<vmem>>, vector<4x2xf32>
    tpu.vector_store %arg7[%c0_41, %c4], %45 {strides = array<i32>} : memref<4x8xf32, #tpu.memory_space<vmem>>, vector<4x2xf32>,
    %47 = vector.extract_strided_slice %0 {offsets = [0, 78], sizes = [4, 2], strides = [1, 1]} : vector<4x84xf32> to vector<4x2xf32>
    %c0_42 = arith.constant 0 : index
    %c6_43 = arith.constant 6 : index
    %48 = vector.load %arg7[%c0_42, %c6_43] : memref<4x8xf32, #tpu.memory_space<vmem>>, vector<4x2xf32>
    tpu.vector_store %arg7[%c0_42, %c6_43], %47 {strides = array<i32>} : memref<4x8xf32, #tpu.memory_space<vmem>>, vector<4x2xf32>,
    %49 = vector.extract_strided_slice %0 {offsets = [0, 17], sizes = [4, 2], strides = [1, 1]} : vector<4x84xf32> to vector<4x2xf32>
    %c0_44 = arith.constant 0 : index
    %c0_45 = arith.constant 0 : index
    %50 = vector.load %arg8[%c0_44, %c0_45] : memref<4x8xf32, #tpu.memory_space<vmem>>, vector<4x2xf32>
    tpu.vector_store %arg8[%c0_44, %c0_45], %49 {strides = array<i32>} : memref<4x8xf32, #tpu.memory_space<vmem>>, vector<4x2xf32>,
    %51 = vector.extract_strided_slice %0 {offsets = [0, 38], sizes = [4, 2], strides = [1, 1]} : vector<4x84xf32> to vector<4x2xf32>
    %c0_46 = arith.constant 0 : index
    %c2_47 = arith.constant 2 : index
    %52 = vector.load %arg8[%c0_46, %c2_47] : memref<4x8xf32, #tpu.memory_space<vmem>>, vector<4x2xf32>
    tpu.vector_store %arg8[%c0_46, %c2_47], %51 {strides = array<i32>} : memref<4x8xf32, #tpu.memory_space<vmem>>, vector<4x2xf32>,
    %53 = vector.extract_strided_slice %0 {offsets = [0, 59], sizes = [4, 2], strides = [1, 1]} : vector<4x84xf32> to vector<4x2xf32>
    %c0_48 = arith.constant 0 : index
    %c4_49 = arith.constant 4 : index
    %54 = vector.load %arg8[%c0_48, %c4_49] : memref<4x8xf32, #tpu.memory_space<vmem>>, vector<4x2xf32>
    tpu.vector_store %arg8[%c0_48, %c4_49], %53 {strides = array<i32>} : memref<4x8xf32, #tpu.memory_space<vmem>>, vector<4x2xf32>,
    %55 = vector.extract_strided_slice %0 {offsets = [0, 80], sizes = [4, 2], strides = [1, 1]} : vector<4x84xf32> to vector<4x2xf32>
    %c0_50 = arith.constant 0 : index
    %c6_51 = arith.constant 6 : index
    %56 = vector.load %arg8[%c0_50, %c6_51] : memref<4x8xf32, #tpu.memory_space<vmem>>, vector<4x2xf32>
    tpu.vector_store %arg8[%c0_50, %c6_51], %55 {strides = array<i32>} : memref<4x8xf32, #tpu.memory_space<vmem>>, vector<4x2xf32>,
    %57 = vector.extract_strided_slice %0 {offsets = [0, 19], sizes = [4, 2], strides = [1, 1]} : vector<4x84xf32> to vector<4x2xf32>
    %c0_52 = arith.constant 0 : index
    %c0_53 = arith.constant 0 : index
    %58 = vector.load %arg9[%c0_52, %c0_53] : memref<4x8xf32, #tpu.memory_space<vmem>>, vector<4x2xf32>
    tpu.vector_store %arg9[%c0_52, %c0_53], %57 {strides = array<i32>} : memref<4x8xf32, #tpu.memory_space<vmem>>, vector<4x2xf32>,
    %59 = vector.extract_strided_slice %0 {offsets = [0, 40], sizes = [4, 2], strides = [1, 1]} : vector<4x84xf32> to vector<4x2xf32>
    %c0_54 = arith.constant 0 : index
    %c2_55 = arith.constant 2 : index
    %60 = vector.load %arg9[%c0_54, %c2_55] : memref<4x8xf32, #tpu.memory_space<vmem>>, vector<4x2xf32>
    tpu.vector_store %arg9[%c0_54, %c2_55], %59 {strides = array<i32>} : memref<4x8xf32, #tpu.memory_space<vmem>>, vector<4x2xf32>,
    %61 = vector.extract_strided_slice %0 {offsets = [0, 61], sizes = [4, 2], strides = [1, 1]} : vector<4x84xf32> to vector<4x2xf32>
    %c0_56 = arith.constant 0 : index
    %c4_57 = arith.constant 4 : index
    %62 = vector.load %arg9[%c0_56, %c4_57] : memref<4x8xf32, #tpu.memory_space<vmem>>, vector<4x2xf32>
    tpu.vector_store %arg9[%c0_56, %c4_57], %61 {strides = array<i32>} : memref<4x8xf32, #tpu.memory_space<vmem>>, vector<4x2xf32>,
    %63 = vector.extract_strided_slice %0 {offsets = [0, 82], sizes = [4, 2], strides = [1, 1]} : vector<4x84xf32> to vector<4x2xf32>
    %c0_58 = arith.constant 0 : index
    %c6_59 = arith.constant 6 : index
    %64 = vector.load %arg9[%c0_58, %c6_59] : memref<4x8xf32, #tpu.memory_space<vmem>>, vector<4x2xf32>
    tpu.vector_store %arg9[%c0_58, %c6_59], %63 {strides = array<i32>} : memref<4x8xf32, #tpu.memory_space<vmem>>, vector<4x2xf32>,
    return
  }
  func.func @transform_0(%arg0: i32) -> (i32, i32) {
    %c0_i32 = arith.constant 0 : i32
    %c0_i32_0 = arith.constant 0 : i32
    return %arg0, %c0_i32 : i32, i32
  }
  func.func @transform_1(%arg0: i32) -> (i32, i32) {
    %c0_i32 = arith.constant 0 : i32
    %c0_i32_0 = arith.constant 0 : i32
    return %arg0, %c0_i32 : i32, i32
  }
  func.func @transform_2(%arg0: i32) -> (i32, i32) {
    %c0_i32 = arith.constant 0 : i32
    %c0_i32_0 = arith.constant 0 : i32
    return %arg0, %c0_i32 : i32, i32
  }
  func.func @transform_3(%arg0: i32) -> (i32, i32) {
    %c0_i32 = arith.constant 0 : i32
    %c0_i32_0 = arith.constant 0 : i32
    return %arg0, %c0_i32 : i32, i32
  }
  func.func @transform_4(%arg0: i32) -> (i32, i32) {
    %c0_i32 = arith.constant 0 : i32
    %c0_i32_0 = arith.constant 0 : i32
    return %arg0, %c0_i32 : i32, i32
  }
  func.func @transform_5(%arg0: i32) -> (i32, i32) {
    %c0_i32 = arith.constant 0 : i32
    %c0_i32_0 = arith.constant 0 : i32
    return %arg0, %c0_i32 : i32, i32
  }
  func.func @transform_6(%arg0: i32) -> (i32, i32) {
    %c0_i32 = arith.constant 0 : i32
    %c0_i32_0 = arith.constant 0 : i32
    return %arg0, %c0_i32 : i32, i32
  }
  func.func @transform_7(%arg0: i32) -> (i32, i32) {
    %c0_i32 = arith.constant 0 : i32
    %c0_i32_0 = arith.constant 0 : i32
    return %arg0, %c0_i32 : i32, i32
  }
  func.func @transform_8(%arg0: i32) -> (i32, i32) {
    %c0_i32 = arith.constant 0 : i32
    %c0_i32_0 = arith.constant 0 : i32
    return %arg0, %c0_i32 : i32, i32
  }
}

</mosaic_0001>

<llo_original>
// kernel: tpu_custom_call.1
$region0: #{tpu_custom_call.1}
  #allocation0 [shape = 'u32[]', space=smem, size = 0x4, offset = 0x4, fixed_abs, tag = 'smem constant byte address 0x4 - core index']
  #allocation1 [shape = 'u32[144,128]{1,0:T(1,128)}', space=vmem, size = 0x12000, scoped, tag = 'internal scratch']
  %s0 = inlined_call_operand.hbm [shape: f32[4,84], index: 0, kind: input, shape index: {}]
  %s1 = inlined_call_operand.hbm [shape: f32[4,12], index: 1, kind: output, shape index: {0}]
  %s2 = inlined_call_operand.hbm [shape: f32[4,12], index: 2, kind: output, shape index: {1}]
  %s3 = inlined_call_operand.hbm [shape: f32[4,12], index: 3, kind: output, shape index: {2}]
  %s4 = inlined_call_operand.hbm [shape: f32[4,12], index: 4, kind: output, shape index: {3}]
  %s5 = inlined_call_operand.hbm [shape: f32[4,12], index: 5, kind: output, shape index: {4}]
  %s6 = inlined_call_operand.hbm [shape: f32[4,8], index: 6, kind: output, shape index: {5}]
  %s7 = inlined_call_operand.hbm [shape: f32[4,8], index: 7, kind: output, shape index: {6}]
  %s8 = inlined_call_operand.hbm [shape: f32[4,8], index: 8, kind: output, shape index: {7}]
  %9 = xla_tuple %s1, %s2, %s3, %s4, %s5, %s6, %s7, %s8
  %s10 = sld [smem:[#allocation0]]
  $region74: #{tpu_custom_call.1} parent=0
    _
  %s12 = ssub.s32 1, %s10
  %s13 = scalar_select 0, %s12, %s10
  $region1: #{tpu_custom_call.1} parent=0
    #allocation2 [shape = 'u8[2048]{0}', space=vmem, size = 0x800, scoped, tag = 'input window, operand 0, single buffered']
    #allocation3 [shape = 's32[1]{0}', space=sflag, size = 0x4, scoped, tag = 'scoped memory for tpu_custom_call.1']
    #allocation4 [shape = 's32[1]{0}', space=sflag, size = 0x4, scoped, tag = 'scoped memory for tpu_custom_call.1']
    #allocation5 [shape = 'u8[2048]{0}', space=vmem, size = 0x800, scoped, tag = 'output window, operand 0, single buffered']
    #allocation6 [shape = 'u8[2048]{0}', space=vmem, size = 0x800, scoped, tag = 'output window, operand 1, single buffered']
    #allocation7 [shape = 's32[1]{0}', space=sflag, size = 0x4, scoped, tag = 'scoped memory for tpu_custom_call.1']
    #allocation8 [shape = 'u8[2048]{0}', space=vmem, size = 0x800, scoped, tag = 'output window, operand 2, single buffered']
    #allocation9 [shape = 'u8[2048]{0}', space=vmem, size = 0x800, scoped, tag = 'output window, operand 3, single buffered']
    #allocation10 [shape = 's32[1]{0}', space=sflag, size = 0x4, scoped, tag = 'scoped memory for tpu_custom_call.1']
    #allocation11 [shape = 'u8[2048]{0}', space=vmem, size = 0x800, scoped, tag = 'output window, operand 4, single buffered']
    #allocation12 [shape = 'u8[2048]{0}', space=vmem, size = 0x800, scoped, tag = 'output window, operand 5, single buffered']
    #allocation13 [shape = 's32[1]{0}', space=sflag, size = 0x4, scoped, tag = 'scoped memory for tpu_custom_call.1']
    #allocation14 [shape = 'u8[2048]{0}', space=vmem, size = 0x800, scoped, tag = 'output window, operand 6, single buffered']
    #allocation15 [shape = 'u8[2048]{0}', space=vmem, size = 0x800, scoped, tag = 'output window, operand 7, single buffered']
    #allocation16 [shape = 's32[1]{0}', space=sflag, size = 0x4, scoped, tag = 'scoped memory for tpu_custom_call.1']
    %14 = vsyncpa [#allocation3], 0
    %15 = vsyncpa [#allocation4], 0
    %16 = vsyncpa [#allocation7], 0
    %17 = vsyncpa [#allocation10], 0
    %18 = vsyncpa [#allocation13], 0
    %19 = vsyncpa [#allocation16], 0
    // Predicated region
    $region2: #{tpu_custom_call.1} parent=1 // pred_check
      _
    $region3: #{tpu_custom_call.1} parent=1 // pred_check_branch
      %21 = sbr.rel (0) target = $region5
    $region4: #{tpu_custom_call.1} parent=1 // pred_region
      %s23 = ssub.s32 64, 64
      %24 = vsyncadd [#allocation3], %s23
      %s26 = sshll.u32 [#allocation2], 4
      %s27 = int_to_ptr.vmem [resolvable:$true] %s26
      %29 = dma.hbm_to_vmem [thread:$0]  %s0, 64, %s27, [#allocation3]
    $region5: #{tpu_custom_call.1} parent=1 // pred_fallthru
      _
    // Predicated region
    $region6: #{tpu_custom_call.1} parent=1 // pred_check
      _
    $region7: #{tpu_custom_call.1} parent=1 // pred_check_branch
      %31 = sbr.rel (0) target = $region9
    $region8: #{tpu_custom_call.1} parent=1 // pred_region
      %32 = dma.done [#allocation3], 64
    $region9: #{tpu_custom_call.1} parent=1 // pred_fallthru
      _
    %v33 = vld [vmem:[#allocation2] sm:$0xf]
    %vm34 = vcmask 19456
    %35 = vst.msk [vmem:[#allocation5] sm:$0xf] %vm34, %v33
    %37 = vrot.lane.b32.xlu0 %v33, 110
    %v38 = vpop.permute.xlu0 %37
    %vm40 = vcmask 44056
    %41 = vst.msk [vmem:[#allocation5] sm:$0xf] %vm40, %v38
    %42 = vrot.lane.b32.xlu0 %v33, 92
    %v43 = vpop.permute.xlu0 %42
    %vm45 = vcmask 68656
    %46 = vst.msk [vmem:[#allocation5] sm:$0xf] %vm45, %v43
    %47 = vrot.lane.b32.xlu0 %v33, 74
    %v48 = vpop.permute.xlu0 %47
    %vm50 = vcmask 93256
    %51 = vst.msk [vmem:[#allocation5] sm:$0xf] %vm50, %v48
    %52 = vrot.lane.b32.xlu0 %v33, 125
    %v53 = vpop.permute.xlu0 %52
    %55 = vst.msk [vmem:[#allocation6] sm:$0xf] %vm34, %v53
    %56 = vrot.lane.b32.xlu0 %v33, 107
    %v57 = vpop.permute.xlu0 %56
    %59 = vst.msk [vmem:[#allocation6] sm:$0xf] %vm40, %v57
    %60 = vrot.lane.b32.xlu0 %v33, 89
    %v61 = vpop.permute.xlu0 %60
    %63 = vst.msk [vmem:[#allocation6] sm:$0xf] %vm45, %v61
    %64 = vrot.lane.b32.xlu0 %v33, 71
    %v65 = vpop.permute.xlu0 %64
    %67 = vst.msk [vmem:[#allocation6] sm:$0xf] %vm50, %v65
    %68 = vrot.lane.b32.xlu0 %v33, 122
    %v69 = vpop.permute.xlu0 %68
    %71 = vst.msk [vmem:[#allocation8] sm:$0xf] %vm34, %v69
    %72 = vrot.lane.b32.xlu0 %v33, 104
    %v73 = vpop.permute.xlu0 %72
    %75 = vst.msk [vmem:[#allocation8] sm:$0xf] %vm40, %v73
    %76 = vrot.lane.b32.xlu0 %v33, 86
    %v77 = vpop.permute.xlu0 %76
    %79 = vst.msk [vmem:[#allocation8] sm:$0xf] %vm45, %v77
    %80 = vrot.lane.b32.xlu0 %v33, 68
    %v81 = vpop.permute.xlu0 %80
    %83 = vst.msk [vmem:[#allocation8] sm:$0xf] %vm50, %v81
    %84 = vrot.lane.b32.xlu0 %v33, 119
    %v85 = vpop.permute.xlu0 %84
    %87 = vst.msk [vmem:[#allocation9] sm:$0xf] %vm34, %v85
    %88 = vrot.lane.b32.xlu0 %v33, 101
    %v89 = vpop.permute.xlu0 %88
    %91 = vst.msk [vmem:[#allocation9] sm:$0xf] %vm40, %v89
    %92 = vrot.lane.b32.xlu0 %v33, 83
    %v93 = vpop.permute.xlu0 %92
    %95 = vst.msk [vmem:[#allocation9] sm:$0xf] %vm45, %v93
    %96 = vrot.lane.b32.xlu0 %v33, 65
    %v97 = vpop.permute.xlu0 %96
    %99 = vst.msk [vmem:[#allocation9] sm:$0xf] %vm50, %v97
    %100 = vrot.lane.b32.xlu0 %v33, 116
    %v101 = vpop.permute.xlu0 %100
    %103 = vst.msk [vmem:[#allocation11] sm:$0xf] %vm34, %v101
    %104 = vrot.lane.b32.xlu0 %v33, 98
    %v105 = vpop.permute.xlu0 %104
    %107 = vst.msk [vmem:[#allocation11] sm:$0xf] %vm40, %v105
    %108 = vrot.lane.b32.xlu0 %v33, 80
    %v109 = vpop.permute.xlu0 %108
    %111 = vst.msk [vmem:[#allocation11] sm:$0xf] %vm45, %v109
    %112 = vrot.lane.b32.xlu0 %v33, 62
    %v113 = vpop.permute.xlu0 %112
    %115 = vst.msk [vmem:[#allocation11] sm:$0xf] %vm50, %v113
    %116 = vrot.lane.b32.xlu0 %v33, 113
    %v117 = vpop.permute.xlu0 %116
    %vm119 = vcmask 11264
    %120 = vst.msk [vmem:[#allocation12] sm:$0xf] %vm119, %v117
    %121 = vrot.lane.b32.xlu0 %v33, 94
    %v122 = vpop.permute.xlu0 %121
    %vm124 = vcmask 27664
    %125 = vst.msk [vmem:[#allocation12] sm:$0xf] %vm124, %v122
    %126 = vrot.lane.b32.xlu0 %v33, 75
    %v127 = vpop.permute.xlu0 %126
    %vm129 = vcmask 44064
    %130 = vst.msk [vmem:[#allocation12] sm:$0xf] %vm129, %v127
    %131 = vrot.lane.b32.xlu0 %v33, 56
    %v132 = vpop.permute.xlu0 %131
    %vm134 = vcmask 60464
    %135 = vst.msk [vmem:[#allocation12] sm:$0xf] %vm134, %v132
    %136 = vrot.lane.b32.xlu0 %v33, 111
    %v137 = vpop.permute.xlu0 %136
    %139 = vst.msk [vmem:[#allocation14] sm:$0xf] %vm119, %v137
    %140 = vst.msk [vmem:[#allocation14] sm:$0xf] %vm124, %v43
    %141 = vrot.lane.b32.xlu0 %v33, 73
    %v142 = vpop.permute.xlu0 %141
    %144 = vst.msk [vmem:[#allocation14] sm:$0xf] %vm129, %v142
    %145 = vrot.lane.b32.xlu0 %v33, 54
    %v146 = vpop.permute.xlu0 %145
    %148 = vst.msk [vmem:[#allocation14] sm:$0xf] %vm134, %v146
    %149 = vrot.lane.b32.xlu0 %v33, 109
    %v150 = vpop.permute.xlu0 %149
    %152 = vst.msk [vmem:[#allocation15] sm:$0xf] %vm119, %v150
    %153 = vrot.lane.b32.xlu0 %v33, 90
    %v154 = vpop.permute.xlu0 %153
    %156 = vst.msk [vmem:[#allocation15] sm:$0xf] %vm124, %v154
    %157 = vst.msk [vmem:[#allocation15] sm:$0xf] %vm129, %v65
    %158 = vrot.lane.b32.xlu0 %v33, 52
    %v159 = vpop.permute.xlu0 %158
    %161 = vst.msk [vmem:[#allocation15] sm:$0xf] %vm134, %v159
    // Predicated region
    $region10: #{tpu_custom_call.1} parent=1 // pred_check
      _
    $region11: #{tpu_custom_call.1} parent=1 // pred_check_branch
      %163 = sbr.rel (0) target = $region13
    $region12: #{tpu_custom_call.1} parent=1 // pred_region
      %s165 = ssub.s32 64, 64
      %166 = vsyncadd [#allocation4], %s165
      %s168 = sshll.u32 [#allocation5], 4
      %s169 = int_to_ptr.vmem [resolvable:$true] %s168
      %171 = dma.vmem_to_hbm [thread:$0]  %s169, 64, %s1, [#allocation4]
    $region13: #{tpu_custom_call.1} parent=1 // pred_fallthru
      _
    // Predicated region
    $region14: #{tpu_custom_call.1} parent=1 // pred_check
      _
    $region15: #{tpu_custom_call.1} parent=1 // pred_check_branch
      %173 = sbr.rel (0) target = $region17
    $region16: #{tpu_custom_call.1} parent=1 // pred_region
      %s175 = ssub.s32 64, 64
      %176 = vsyncadd [#allocation7], %s175
      %s178 = sshll.u32 [#allocation6], 4
      %s179 = int_to_ptr.vmem [resolvable:$true] %s178
      %181 = dma.vmem_to_hbm [thread:$0]  %s179, 64, %s2, [#allocation7]
    $region17: #{tpu_custom_call.1} parent=1 // pred_fallthru
      _
    // Predicated region
    $region18: #{tpu_custom_call.1} parent=1 // pred_check
      _
    $region19: #{tpu_custom_call.1} parent=1 // pred_check_branch
      %183 = sbr.rel (0) target = $region21
    $region20: #{tpu_custom_call.1} parent=1 // pred_region
      %s185 = ssub.s32 64, 64
      %186 = vsyncadd [#allocation7], %s185
      %s188 = sshll.u32 [#allocation8], 4
      %s189 = int_to_ptr.vmem [resolvable:$true] %s188
      %191 = dma.vmem_to_hbm [thread:$0]  %s189, 64, %s3, [#allocation7]
    $region21: #{tpu_custom_call.1} parent=1 // pred_fallthru
      _
    // Predicated region
    $region22: #{tpu_custom_call.1} parent=1 // pred_check
      _
    $region23: #{tpu_custom_call.1} parent=1 // pred_check_branch
      %193 = sbr.rel (0) target = $region25
    $region24: #{tpu_custom_call.1} parent=1 // pred_region
      %s195 = ssub.s32 64, 64
      %196 = vsyncadd [#allocation10], %s195
      %s198 = sshll.u32 [#allocation9], 4
      %s199 = int_to_ptr.vmem [resolvable:$true] %s198
      %201 = dma.vmem_to_hbm [thread:$0]  %s199, 64, %s4, [#allocation10]
    $region25: #{tpu_custom_call.1} parent=1 // pred_fallthru
      _
    // Predicated region
    $region26: #{tpu_custom_call.1} parent=1 // pred_check
      _
    $region27: #{tpu_custom_call.1} parent=1 // pred_check_branch
      %203 = sbr.rel (0) target = $region29
    $region28: #{tpu_custom_call.1} parent=1 // pred_region
      %s205 = ssub.s32 64, 64
      %206 = vsyncadd [#allocation10], %s205
      %s208 = sshll.u32 [#allocation11], 4
      %s209 = int_to_ptr.vmem [resolvable:$true] %s208
      %211 = dma.vmem_to_hbm [thread:$0]  %s209, 64, %s5, [#allocation10]
    $region29: #{tpu_custom_call.1} parent=1 // pred_fallthru
      _
    // Predicated region
    $region30: #{tpu_custom_call.1} parent=1 // pred_check
      _
    $region31: #{tpu_custom_call.1} parent=1 // pred_check_branch
      %213 = sbr.rel (0) target = $region33
    $region32: #{tpu_custom_call.1} parent=1 // pred_region
      %s215 = ssub.s32 64, 64
      %216 = vsyncadd [#allocation13], %s215
      %s218 = sshll.u32 [#allocation12], 4
      %s219 = int_to_ptr.vmem [resolvable:$true] %s218
      %221 = dma.vmem_to_hbm [thread:$0]  %s219, 64, %s6, [#allocation13]
    $region33: #{tpu_custom_call.1} parent=1 // pred_fallthru
      _
    // Predicated region
    $region34: #{tpu_custom_call.1} parent=1 // pred_check
      _
    $region35: #{tpu_custom_call.1} parent=1 // pred_check_branch
      %223 = sbr.rel (0) target = $region37
    $region36: #{tpu_custom_call.1} parent=1 // pred_region
      %s225 = ssub.s32 64, 64
      %226 = vsyncadd [#allocation13], %s225
      %s228 = sshll.u32 [#allocation14], 4
      %s229 = int_to_ptr.vmem [resolvable:$true] %s228
      %231 = dma.vmem_to_hbm [thread:$0]  %s229, 64, %s7, [#allocation13]
    $region37: #{tpu_custom_call.1} parent=1 // pred_fallthru
      _
    // Predicated region
    $region38: #{tpu_custom_call.1} parent=1 // pred_check
      _
    $region39: #{tpu_custom_call.1} parent=1 // pred_check_branch
      %233 = sbr.rel (0) target = $region41
    $region40: #{tpu_custom_call.1} parent=1 // pred_region
      %s235 = ssub.s32 64, 64
      %236 = vsyncadd [#allocation16], %s235
      %s238 = sshll.u32 [#allocation15], 4
      %s239 = int_to_ptr.vmem [resolvable:$true] %s238
      %241 = dma.vmem_to_hbm [thread:$0]  %s239, 64, %s8, [#allocation16]
    $region41: #{tpu_custom_call.1} parent=1 // pred_fallthru
      _
    // Predicated region
    $region42: #{tpu_custom_call.1} parent=1 // pred_check
      _
    $region43: #{tpu_custom_call.1} parent=1 // pred_check_branch
      %243 = sbr.rel (0) target = $region45
    $region44: #{tpu_custom_call.1} parent=1 // pred_region
      %244 = dma.done [#allocation4], 64
    $region45: #{tpu_custom_call.1} parent=1 // pred_fallthru
      _
    // Predicated region
    $region46: #{tpu_custom_call.1} parent=1 // pred_check
      _
    $region47: #{tpu_custom_call.1} parent=1 // pred_check_branch
      %246 = sbr.rel (0) target = $region49
    $region48: #{tpu_custom_call.1} parent=1 // pred_region
      %247 = dma.done [#allocation7], 64
    $region49: #{tpu_custom_call.1} parent=1 // pred_fallthru
      _
    // Predicated region
    $region50: #{tpu_custom_call.1} parent=1 // pred_check
      _
    $region51: #{tpu_custom_call.1} parent=1 // pred_check_branch
      %249 = sbr.rel (0) target = $region53
    $region52: #{tpu_custom_call.1} parent=1 // pred_region
      %250 = dma.done [#allocation7], 64
    $region53: #{tpu_custom_call.1} parent=1 // pred_fallthru
      _
    // Predicated region
    $region54: #{tpu_custom_call.1} parent=1 // pred_check
      _
    $region55: #{tpu_custom_call.1} parent=1 // pred_check_branch
      %252 = sbr.rel (0) target = $region57
    $region56: #{tpu_custom_call.1} parent=1 // pred_region
      %253 = dma.done [#allocation10], 64
    $region57: #{tpu_custom_call.1} parent=1 // pred_fallthru
      _
    // Predicated region
    $region58: #{tpu_custom_call.1} parent=1 // pred_check
      _
    $region59: #{tpu_custom_call.1} parent=1 // pred_check_branch
      %255 = sbr.rel (0) target = $region61
    $region60: #{tpu_custom_call.1} parent=1 // pred_region
      %256 = dma.done [#allocation10], 64
    $region61: #{tpu_custom_call.1} parent=1 // pred_fallthru
      _
    // Predicated region
    $region62: #{tpu_custom_call.1} parent=1 // pred_check
      _
    $region63: #{tpu_custom_call.1} parent=1 // pred_check_branch
      %258 = sbr.rel (0) target = $region65
    $region64: #{tpu_custom_call.1} parent=1 // pred_region
      %259 = dma.done [#allocation13], 64
    $region65: #{tpu_custom_call.1} parent=1 // pred_fallthru
      _
    // Predicated region
    $region66: #{tpu_custom_call.1} parent=1 // pred_check
      _
    $region67: #{tpu_custom_call.1} parent=1 // pred_check_branch
      %261 = sbr.rel (0) target = $region69
    $region68: #{tpu_custom_call.1} parent=1 // pred_region
      %262 = dma.done [#allocation13], 64
    $region69: #{tpu_custom_call.1} parent=1 // pred_fallthru
      _
    // Predicated region
    $region70: #{tpu_custom_call.1} parent=1 // pred_check
      _
    $region71: #{tpu_custom_call.1} parent=1 // pred_check_branch
      %264 = sbr.rel (0) target = $region73
    $region72: #{tpu_custom_call.1} parent=1 // pred_region
      %265 = dma.done [#allocation16], 64
    $region73: #{tpu_custom_call.1} parent=1 // pred_fallthru
      _
    %266 = vsyncpa [#allocation3], 1
    %267 = vsyncpa [#allocation4], 1
    %268 = vsyncpa [#allocation7], 1
    %269 = vsyncpa [#allocation10], 1
    %270 = vsyncpa [#allocation13], 1
    %271 = vsyncpa [#allocation16], 1

</llo_original>
